<compile_context>
chip_gen: v6e
topology: v6e:2x2x1
jax: 0.10.0
libtpu: 0.0.40
codegen_flags: <defaults>
</compile_context>

<pallas_src>
import functools

import jax
import jax.numpy as jnp
from jax.experimental import pallas as pl
from jax.experimental.pallas import tpu as pltpu


def dense_gate_kernel(x_ref, w_ref, paux_ref, noise_ref, o_ref,
                      *, n_expert, block_b, hw_valid):
    E = n_expert
    bb = block_b
    R = E * bb                                   # rows of the per-(expert,batch) stacks
    HWp = x_ref.shape[-1]
    inv_hw = 1.0 / float(hw_valid)
    inv_e = 1.0 / float(E)

    # Packed f32 aux params: [w1k | w2k | b1 | b2 | bg | be | spatial(ws0,ws1,bs in row 0)]
    P = paux_ref[...]                            # [R, 2R+7] f32
    w1k = P[:, 0:R]                              # CBAM channel MLP layer 1 (kron-blocked)
    w2k = P[:, R:2 * R]                          # CBAM channel MLP layer 2 (kron-blocked)
    b1 = P[:, 2 * R:2 * R + 1]
    b2 = P[:, 2 * R + 1:2 * R + 2]
    bg = P[:, 2 * R + 2:2 * R + 3]               # gate conv bias   (tiled, e-major rows)
    be = P[:, 2 * R + 3:2 * R + 4]               # expert conv bias (tiled, e-major rows)
    ws_mean = P[0:1, 2 * R + 4:2 * R + 5]        # spatial-attention weight (mean pool)
    ws_max = P[0:1, 2 * R + 5:2 * R + 6]         # spatial-attention weight (max pool)
    bs = P[0:1, 2 * R + 6:2 * R + 7]             # spatial-attention bias

    # ---- ONE stacked MXU dot: gate + expert 1x1 convs for the whole batch block ----
    # Rows of gall: 0..R-1 = gate conv (row = e*bb + bi), R..2R-1 = experts (same order).
    gall = jnp.dot(w_ref[...], x_ref[...],
                   preferred_element_type=jnp.float32)            # [2R, HWp] f32
    g = gall[:R, :] + bg                                          # gate conv out
    preds = gall[R:, :] + be                                      # expert predictions

    # lane mask for padded HW (only used for the over-HW poolings)
    if hw_valid != HWp:
        lane = jax.lax.broadcasted_iota(jnp.int32, (R, HWp), 1)
        valid = lane < hw_valid
        g_sum_src = jnp.where(valid, g, 0.0)
        g_max_src = jnp.where(valid, g, -jnp.inf)
    else:
        g_sum_src = g
        g_max_src = g

    # ---- CBAM channel attention: avg/max pool over HW, shared 2-layer MLP, sigmoid ----
    avg_p = jnp.sum(g_sum_src, axis=1, keepdims=True) * inv_hw    # [R, 1]
    max_p = jnp.max(g_max_src, axis=1, keepdims=True)             # [R, 1]
    stats = jnp.concatenate([avg_p, max_p], axis=1)               # [R, 2]
    h = jnp.maximum(
        jnp.dot(w1k, stats, preferred_element_type=jnp.float32) + b1, 0.0)
    z = jnp.dot(w2k, h, preferred_element_type=jnp.float32) + b2  # [R, 2]
    ch_att = jax.nn.sigmoid(z[:, 0:1] + z[:, 1:2])                # [R, 1]
    g_c = g * ch_att

    # ---- CBAM spatial attention: pool over experts per batch element ----
    # Per-expert chunks are contiguous [bb, HWp] row slices (e-major layout).
    sp_sum = g_c[0:bb, :]
    sp_max = g_c[0:bb, :]
    for e in range(1, E):
        part = g_c[e * bb:(e + 1) * bb, :]
        sp_sum = sp_sum + part
        sp_max = jnp.maximum(sp_max, part)
    sp_att = jax.nn.sigmoid(ws_mean * (sp_sum * inv_e) + ws_max * sp_max + bs)  # [bb, HWp]
    ge = g_c * jnp.tile(sp_att, (E, 1))                           # [R, HWp]

    # ---- gumbel softmax over experts (tau = 1); noise = gumbel1 + gumbel2 pre-summed ----
    logits = ge + noise_ref[...]                                  # [R, HWp]
    lmax = logits[0:bb, :]
    for e in range(1, E):
        lmax = jnp.maximum(lmax, logits[e * bb:(e + 1) * bb, :])
    ez = jnp.exp(logits - jnp.tile(lmax, (E, 1)))                 # [R, HWp]

    # ---- weighted combination of experts (denominator factored out) ----
    den = ez[0:bb, :]
    num = ez[0:bb, :] * preds[0:bb, :]
    for e in range(1, E):
        den = den + ez[e * bb:(e + 1) * bb, :]
        num = num + ez[e * bb:(e + 1) * bb, :] * preds[e * bb:(e + 1) * bb, :]

    # one lane/sublane-dense store per grid step
    o_ref[...] = num / den                                        # [bb, HWp]


def _pick_block_b(B):
    # Modest batch blocks (~8 elems) keep the x tile small (v7x 64 MiB VMEM safe),
    # keep the output store sublane-dense, and give the pipeline a steady state.
    for d in (8, 16):
        if B > d and B % d == 0:
            return d
    return B            # small batches: single grid step over the whole batch


def _pack_params(p, n_expert, block_b):
    """Pack raw params into (bf16 stacked block-diag conv weight, f32 aux array)."""
    E = n_expert
    bb = block_b
    R = E * bb
    eye_b = jnp.eye(bb, dtype=jnp.float32)

    def block_diag_conv(w):                      # [E, C] -> [E*bb, bb*C]
        t = jnp.einsum('ec,ij->eijc', w, eye_b)  # row = e*bb+i, col = j*C+c, nonzero iff i==j
        return t.reshape(E * bb, bb * w.shape[1])

    w_block = jnp.concatenate(
        [block_diag_conv(p['wg']), block_diag_conv(p['we'])], axis=0
    ).astype(jnp.bfloat16)                       # [2R, bb*C]

    def tile_bias(b):                            # [E] -> [R, 1], e-major rows
        return jnp.repeat(b.reshape(E, 1), bb, axis=0)

    w1k = jnp.kron(p['w1'], eye_b)               # [R, R] : per-batch CBAM MLP, batched
    w2k = jnp.kron(p['w2'], eye_b)
    sp = jnp.zeros((R, 3), jnp.float32)
    sp = sp.at[0, 0].set(p['ws'][0]).at[0, 1].set(p['ws'][1]).at[0, 2].set(p['bs'])
    paux = jnp.concatenate(
        [w1k, w2k, tile_bias(p['b1']), tile_bias(p['b2']),
         tile_bias(p['bg']), tile_bias(p['be']), sp], axis=1)     # [R, 2R+7]
    return w_block, paux


def dense_gate(x_nchw, params, noise_key):
    """x_nchw: [B, C, H, W] float32.  params: dict of raw module parameters."""
    B, C, H, W = x_nchw.shape
    E = params['wg'].shape[0]
    HW = H * W
    HWp = ((HW + 127) // 128) * 128              # lane-dense layout
    block_b = _pick_block_b(B)
    nblocks = B // block_b
    R = E * block_b

    # x layout: [nblocks, block_b*C, HWp] bf16 (MXU operand; all elementwise math stays f32)
    x = x_nchw.reshape(B, C, HW)
    if HWp != HW:
        # TODO(synk): handle the ragged HW tail in-kernel to avoid this extra HBM copy.
        x = jnp.pad(x, ((0, 0), (0, 0), (0, HWp - HW)))
    x = x.reshape(nblocks, block_b * C, HWp).astype(jnp.bfloat16)

    w_block, paux = _pack_params(params, E, block_b)

    # Combined Gumbel noise (gumbel_rsample + gumbel_softmax's internal draw), drawn host-side.
    k1, k2 = jax.random.split(noise_key, 2)
    noise = (jax.random.gumbel(k1, (nblocks, R, HWp), jnp.float32)
             + jax.random.gumbel(k2, (nblocks, R, HWp), jnp.float32))

    kernel = functools.partial(dense_gate_kernel,
                               n_expert=E, block_b=block_b, hw_valid=HW)

    out = pl.pallas_call(
        kernel,
        out_shape=jax.ShapeDtypeStruct((nblocks, block_b, HWp), jnp.float32),
        grid=(nblocks,),
        in_specs=[
            pl.BlockSpec((None, block_b * C, HWp), lambda b: (b, 0, 0)),
            pl.BlockSpec(w_block.shape, lambda b: (0, 0)),
            pl.BlockSpec(paux.shape, lambda b: (0, 0)),
            pl.BlockSpec((None, R, HWp), lambda b: (b, 0, 0)),
        ],
        out_specs=pl.BlockSpec((None, block_b, HWp), lambda b: (b, 0, 0)),
        compiler_params=pltpu.CompilerParams(dimension_semantics=("parallel",)),
    )(x, w_block, paux, noise)

    out = out.reshape(B, HWp)
    if HWp != HW:
        out = out[:, :HW]
    return out.reshape(B, H, W)


def make_params(key, n_expert, in_ch=4):
    """Deterministic xavier-uniform weights, zero biases (matches the module's init)."""
    E = n_expert
    ks = jax.random.split(key, 5)

    def xavier(k, shape, fan_in, fan_out):
        bound = (6.0 / (fan_in + fan_out)) ** 0.5
        return jax.random.uniform(k, shape, jnp.float32, -bound, bound)

    return dict(
        wg=xavier(ks[0], (E, in_ch), in_ch, E),    # gate 1x1 conv weight
        we=xavier(ks[1], (E, in_ch), in_ch, 1),    # experts: 1x1 conv 4->1 each
        w1=xavier(ks[2], (E, E), E, E),            # CBAM channel MLP layer 1
        w2=xavier(ks[3], (E, E), E, E),            # CBAM channel MLP layer 2
        ws=xavier(ks[4], (2,), 2, 1),              # CBAM spatial 1x1 conv weight
        bg=jnp.zeros((E,), jnp.float32),
        be=jnp.zeros((E,), jnp.float32),
        b1=jnp.zeros((E,), jnp.float32),
        b2=jnp.zeros((E,), jnp.float32),
        bs=jnp.zeros((), jnp.float32),
    )


if __name__ == "__main__":
    key = jax.random.PRNGKey(0)
    k_x, k_p, k_n = jax.random.split(key, 3)

    B, C, H, W = 2, 4, 16, 16
    n_expert = 4

    x = jax.random.normal(k_x, (B, C, H, W), jnp.float32)
    params = make_params(k_p, n_expert, in_ch=C)

    out = dense_gate(x, params, k_n)
    jax.block_until_ready(out)
    assert out.shape == (B, H, W)
    assert bool(jnp.all(jnp.isfinite(out)))
    print("KERNEL_OK")
</pallas_src>

<mosaic_0001>
module attributes {stable_mosaic.version = 11 : i64} {
  func.func @dense_gate_kernel(%arg0: i32, %arg1: memref<1x8x256xbf16, #tpu.memory_space<vmem>>, %arg2: memref<16x8xbf16, #tpu.memory_space<vmem>>, %arg3: memref<8x23xf32, #tpu.memory_space<vmem>>, %arg4: memref<1x8x256xf32, #tpu.memory_space<vmem>>, %arg5: memref<1x2x256xf32, #tpu.memory_space<vmem>>) attributes {dimension_semantics = [#tpu.dimension_semantics<parallel>], iteration_bounds = array<i64: 1>, scalar_prefetch = 0 : i64, scratch_operands = 0 : i64, tpu.core_type = #tpu.core_type<tc>, window_params = [{transform_indices = @transform_0, window_bounds = array<i64: 1, 8, 256>}, {pipeline_mode = #tpu.pipeline_mode<synchronous>, transform_indices = @transform_1, window_bounds = array<i64: 16, 8>}, {pipeline_mode = #tpu.pipeline_mode<synchronous>, transform_indices = @transform_2, window_bounds = array<i64: 8, 23>}, {transform_indices = @transform_3, window_bounds = array<i64: 1, 8, 256>}, {transform_indices = @transform_4, window_bounds = array<i64: 1, 2, 256>}]} {
    %c0 = arith.constant 0 : index
    %c0_0 = arith.constant 0 : index
    %0 = vector.load %arg3[%c0, %c0_0] : memref<8x23xf32, #tpu.memory_space<vmem>>, vector<8x23xf32>
    %1 = vector.extract_strided_slice %0 {offsets = [0, 0], sizes = [8, 8], strides = [1, 1]} : vector<8x23xf32> to vector<8x8xf32>
    %2 = vector.extract_strided_slice %0 {offsets = [0, 8], sizes = [8, 8], strides = [1, 1]} : vector<8x23xf32> to vector<8x8xf32>
    %3 = vector.extract_strided_slice %0 {offsets = [0, 16], sizes = [8, 1], strides = [1, 1]} : vector<8x23xf32> to vector<8x1xf32>
    %4 = vector.extract_strided_slice %0 {offsets = [0, 17], sizes = [8, 1], strides = [1, 1]} : vector<8x23xf32> to vector<8x1xf32>
    %5 = vector.extract_strided_slice %0 {offsets = [0, 18], sizes = [8, 1], strides = [1, 1]} : vector<8x23xf32> to vector<8x1xf32>
    %6 = vector.extract_strided_slice %0 {offsets = [0, 19], sizes = [8, 1], strides = [1, 1]} : vector<8x23xf32> to vector<8x1xf32>
    %7 = vector.extract_strided_slice %0 {offsets = [0, 20], sizes = [1, 1], strides = [1, 1]} : vector<8x23xf32> to vector<1x1xf32>
    %8 = vector.extract_strided_slice %0 {offsets = [0, 21], sizes = [1, 1], strides = [1, 1]} : vector<8x23xf32> to vector<1x1xf32>
    %9 = vector.extract_strided_slice %0 {offsets = [0, 22], sizes = [1, 1], strides = [1, 1]} : vector<8x23xf32> to vector<1x1xf32>
    %c0_1 = arith.constant 0 : index
    %c0_2 = arith.constant 0 : index
    %10 = vector.load %arg2[%c0_1, %c0_2] : memref<16x8xbf16, #tpu.memory_space<vmem>>, vector<16x8xbf16>
    %c0_3 = arith.constant 0 : index
    %c0_4 = arith.constant 0 : index
    %c0_5 = arith.constant 0 : index
    %11 = vector.load %arg1[%c0_3, %c0_4, %c0_5] : memref<1x8x256xbf16, #tpu.memory_space<vmem>>, vector<1x8x256xbf16>
    %12 = vector.shape_cast %11 : vector<1x8x256xbf16> to vector<8x256xbf16>
    %cst = arith.constant dense<0.000000e+00> : vector<16x256xf32>
    %13 = tpu.matmul %10, %12, %cst {dimension_numbers = #tpu.dot_dimension_numbers<[1], [0], [0], [1], [0, 0, 1, 1], [], []>} : vector<16x8xbf16>, vector<8x256xbf16>, vector<16x256xf32> -> vector<16x256xf32>
    %14 = vector.extract_strided_slice %13 {offsets = [0, 0], sizes = [8, 256], strides = [1, 1]} : vector<16x256xf32> to vector<8x256xf32>
    %15 = vector.broadcast %5 : vector<8x1xf32> to vector<8x256xf32>
    %16 = arith.addf %14, %15 : vector<8x256xf32>
    %17 = vector.extract_strided_slice %13 {offsets = [8, 0], sizes = [8, 256], strides = [1, 1]} : vector<16x256xf32> to vector<8x256xf32>
    %18 = vector.broadcast %6 : vector<8x1xf32> to vector<8x256xf32>
    %19 = arith.addf %17, %18 : vector<8x256xf32>
    %cst_6 = arith.constant dense<0.000000e+00> : vector<8xf32>
    %20 = vector.multi_reduction <add>, %16, %cst_6 [1] : vector<8x256xf32> to vector<8xf32>
    %21 = vector.shape_cast %20 : vector<8xf32> to vector<8x1xf32>
    %cst_7 = arith.constant 3.906250e-03 : f32
    %22 = vector.broadcast %cst_7 : f32 to vector<8x1xf32>
    %23 = arith.mulf %21, %22 : vector<8x1xf32>
    %cst_8 = arith.constant dense<0xFF800000> : vector<8xf32>
    %24 = vector.multi_reduction <maximumf>, %16, %cst_8 [1] : vector<8x256xf32> to vector<8xf32>
    %25 = vector.shape_cast %24 : vector<8xf32> to vector<8x1xf32>
    %26 = tpu.concatenate %23, %25 in 1 : vector<8x1xf32>, vector<8x1xf32> -> vector<8x2xf32>
    %cst_9 = arith.constant dense<0.000000e+00> : vector<8x2xf32>
    %27 = tpu.matmul %1, %26, %cst_9 {dimension_numbers = #tpu.dot_dimension_numbers<[1], [0], [0], [1], [0, 0, 1, 1], [], []>} : vector<8x8xf32>, vector<8x2xf32>, vector<8x2xf32> -> vector<8x2xf32>
    %28 = vector.broadcast %3 : vector<8x1xf32> to vector<8x2xf32>
    %29 = arith.addf %27, %28 : vector<8x2xf32>
    %cst_10 = arith.constant 0.000000e+00 : f32
    %30 = vector.broadcast %cst_10 : f32 to vector<8x2xf32>
    %31 = arith.maximumf %29, %30 : vector<8x2xf32>
    %cst_11 = arith.constant dense<0.000000e+00> : vector<8x2xf32>
    %32 = tpu.matmul %2, %31, %cst_11 {dimension_numbers = #tpu.dot_dimension_numbers<[1], [0], [0], [1], [0, 0, 1, 1], [], []>} : vector<8x8xf32>, vector<8x2xf32>, vector<8x2xf32> -> vector<8x2xf32>
    %33 = vector.broadcast %4 : vector<8x1xf32> to vector<8x2xf32>
    %34 = arith.addf %32, %33 : vector<8x2xf32>
    %35 = vector.extract_strided_slice %34 {offsets = [0, 0], sizes = [8, 1], strides = [1, 1]} : vector<8x2xf32> to vector<8x1xf32>
    %36 = vector.extract_strided_slice %34 {offsets = [0, 1], sizes = [8, 1], strides = [1, 1]} : vector<8x2xf32> to vector<8x1xf32>
    %37 = arith.addf %35, %36 : vector<8x1xf32>
    %38 = arith.negf %37 : vector<8x1xf32>
    %39 = math.exp %38 : vector<8x1xf32>
    %cst_12 = arith.constant 1.000000e+00 : f32
    %40 = vector.broadcast %cst_12 : f32 to vector<8x1xf32>
    %41 = arith.addf %40, %39 : vector<8x1xf32>
    %42 = arith.divf %40, %41 : vector<8x1xf32>
    %43 = vector.broadcast %42 : vector<8x1xf32> to vector<8x256xf32>
    %44 = arith.mulf %16, %43 : vector<8x256xf32>
    %45 = vector.extract_strided_slice %44 {offsets = [0, 0], sizes = [2, 256], strides = [1, 1]} : vector<8x256xf32> to vector<2x256xf32>
    %46 = vector.extract_strided_slice %44 {offsets = [0, 0], sizes = [2, 256], strides = [1, 1]} : vector<8x256xf32> to vector<2x256xf32>
    %47 = vector.extract_strided_slice %44 {offsets = [2, 0], sizes = [2, 256], strides = [1, 1]} : vector<8x256xf32> to vector<2x256xf32>
    %48 = arith.addf %45, %47 : vector<2x256xf32>
    %49 = arith.maximumf %46, %47 : vector<2x256xf32>
    %50 = vector.extract_strided_slice %44 {offsets = [4, 0], sizes = [2, 256], strides = [1, 1]} : vector<8x256xf32> to vector<2x256xf32>
    %51 = arith.addf %48, %50 : vector<2x256xf32>
    %52 = arith.maximumf %49, %50 : vector<2x256xf32>
    %53 = vector.extract_strided_slice %44 {offsets = [6, 0], sizes = [2, 256], strides = [1, 1]} : vector<8x256xf32> to vector<2x256xf32>
    %54 = arith.addf %51, %53 : vector<2x256xf32>
    %55 = arith.maximumf %52, %53 : vector<2x256xf32>
    %cst_13 = arith.constant 2.500000e-01 : f32
    %56 = vector.broadcast %cst_13 : f32 to vector<2x256xf32>
    %57 = arith.mulf %54, %56 : vector<2x256xf32>
    %58 = vector.broadcast %7 : vector<1x1xf32> to vector<2x256xf32>
    %59 = arith.mulf %58, %57 : vector<2x256xf32>
    %60 = vector.broadcast %8 : vector<1x1xf32> to vector<2x256xf32>
    %61 = arith.mulf %60, %55 : vector<2x256xf32>
    %62 = arith.addf %59, %61 : vector<2x256xf32>
    %63 = vector.broadcast %9 : vector<1x1xf32> to vector<2x256xf32>
    %64 = arith.addf %62, %63 : vector<2x256xf32>
    %65 = arith.negf %64 : vector<2x256xf32>
    %66 = math.exp %65 : vector<2x256xf32>
    %cst_14 = arith.constant 1.000000e+00 : f32
    %67 = vector.broadcast %cst_14 : f32 to vector<2x256xf32>
    %68 = arith.addf %67, %66 : vector<2x256xf32>
    %69 = arith.divf %67, %68 : vector<2x256xf32>
    %70 = tpu.concatenate %69, %69, %69, %69 in 0 : vector<2x256xf32>, vector<2x256xf32>, vector<2x256xf32>, vector<2x256xf32> -> vector<8x256xf32>
    %71 = arith.mulf %44, %70 : vector<8x256xf32>
    %c0_15 = arith.constant 0 : index
    %c0_16 = arith.constant 0 : index
    %c0_17 = arith.constant 0 : index
    %72 = vector.load %arg4[%c0_15, %c0_16, %c0_17] : memref<1x8x256xf32, #tpu.memory_space<vmem>>, vector<1x8x256xf32>
    %73 = vector.shape_cast %72 : vector<1x8x256xf32> to vector<8x256xf32>
    %74 = arith.addf %71, %73 : vector<8x256xf32>
    %75 = vector.extract_strided_slice %74 {offsets = [0, 0], sizes = [2, 256], strides = [1, 1]} : vector<8x256xf32> to vector<2x256xf32>
    %76 = vector.extract_strided_slice %74 {offsets = [2, 0], sizes = [2, 256], strides = [1, 1]} : vector<8x256xf32> to vector<2x256xf32>
    %77 = arith.maximumf %75, %76 : vector<2x256xf32>
    %78 = vector.extract_strided_slice %74 {offsets = [4, 0], sizes = [2, 256], strides = [1, 1]} : vector<8x256xf32> to vector<2x256xf32>
    %79 = arith.maximumf %77, %78 : vector<2x256xf32>
    %80 = vector.extract_strided_slice %74 {offsets = [6, 0], sizes = [2, 256], strides = [1, 1]} : vector<8x256xf32> to vector<2x256xf32>
    %81 = arith.maximumf %79, %80 : vector<2x256xf32>
    %82 = tpu.concatenate %81, %81, %81, %81 in 0 : vector<2x256xf32>, vector<2x256xf32>, vector<2x256xf32>, vector<2x256xf32> -> vector<8x256xf32>
    %83 = arith.subf %74, %82 : vector<8x256xf32>
    %84 = math.exp %83 : vector<8x256xf32>
    %85 = vector.extract_strided_slice %84 {offsets = [0, 0], sizes = [2, 256], strides = [1, 1]} : vector<8x256xf32> to vector<2x256xf32>
    %86 = vector.extract_strided_slice %84 {offsets = [0, 0], sizes = [2, 256], strides = [1, 1]} : vector<8x256xf32> to vector<2x256xf32>
    %87 = vector.extract_strided_slice %19 {offsets = [0, 0], sizes = [2, 256], strides = [1, 1]} : vector<8x256xf32> to vector<2x256xf32>
    %88 = arith.mulf %86, %87 : vector<2x256xf32>
    %89 = vector.extract_strided_slice %84 {offsets = [2, 0], sizes = [2, 256], strides = [1, 1]} : vector<8x256xf32> to vector<2x256xf32>
    %90 = arith.addf %85, %89 : vector<2x256xf32>
    %91 = vector.extract_strided_slice %84 {offsets = [2, 0], sizes = [2, 256], strides = [1, 1]} : vector<8x256xf32> to vector<2x256xf32>
    %92 = vector.extract_strided_slice %19 {offsets = [2, 0], sizes = [2, 256], strides = [1, 1]} : vector<8x256xf32> to vector<2x256xf32>
    %93 = arith.mulf %91, %92 : vector<2x256xf32>
    %94 = arith.addf %88, %93 : vector<2x256xf32>
    %95 = vector.extract_strided_slice %84 {offsets = [4, 0], sizes = [2, 256], strides = [1, 1]} : vector<8x256xf32> to vector<2x256xf32>
    %96 = arith.addf %90, %95 : vector<2x256xf32>
    %97 = vector.extract_strided_slice %84 {offsets = [4, 0], sizes = [2, 256], strides = [1, 1]} : vector<8x256xf32> to vector<2x256xf32>
    %98 = vector.extract_strided_slice %19 {offsets = [4, 0], sizes = [2, 256], strides = [1, 1]} : vector<8x256xf32> to vector<2x256xf32>
    %99 = arith.mulf %97, %98 : vector<2x256xf32>
    %100 = arith.addf %94, %99 : vector<2x256xf32>
    %101 = vector.extract_strided_slice %84 {offsets = [6, 0], sizes = [2, 256], strides = [1, 1]} : vector<8x256xf32> to vector<2x256xf32>
    %102 = arith.addf %96, %101 : vector<2x256xf32>
    %103 = vector.extract_strided_slice %84 {offsets = [6, 0], sizes = [2, 256], strides = [1, 1]} : vector<8x256xf32> to vector<2x256xf32>
    %104 = vector.extract_strided_slice %19 {offsets = [6, 0], sizes = [2, 256], strides = [1, 1]} : vector<8x256xf32> to vector<2x256xf32>
    %105 = arith.mulf %103, %104 : vector<2x256xf32>
    %106 = arith.addf %100, %105 : vector<2x256xf32>
    %107 = arith.divf %106, %102 : vector<2x256xf32>
    %c0_18 = arith.constant 0 : index
    %c0_19 = arith.constant 0 : index
    %c0_20 = arith.constant 0 : index
    %108 = vector.load %arg5[%c0_18, %c0_19, %c0_20] : memref<1x2x256xf32, #tpu.memory_space<vmem>>, vector<1x2x256xf32>
    %109 = vector.shape_cast %108 : vector<1x2x256xf32> to vector<2x256xf32>
    %110 = vector.shape_cast %107 : vector<2x256xf32> to vector<1x2x256xf32>
    tpu.vector_store %arg5[%c0_18, %c0_19, %c0_20], %110 {strides = array<i32>} : memref<1x2x256xf32, #tpu.memory_space<vmem>>, vector<1x2x256xf32>,
    return
  }
  func.func @transform_0(%arg0: i32) -> (i32, i32, i32) {
    %c0_i32 = arith.constant 0 : i32
    %c0_i32_0 = arith.constant 0 : i32
    %c0_i32_1 = arith.constant 0 : i32
    return %arg0, %c0_i32, %c0_i32_0 : i32, i32, i32
  }
  func.func @transform_1(%arg0: i32) -> (i32, i32) {
    %c0_i32 = arith.constant 0 : i32
    %c0_i32_0 = arith.constant 0 : i32
    %c0_i32_1 = arith.constant 0 : i32
    return %c0_i32, %c0_i32_0 : i32, i32
  }
  func.func @transform_2(%arg0: i32) -> (i32, i32) {
    %c0_i32 = arith.constant 0 : i32
    %c0_i32_0 = arith.constant 0 : i32
    %c0_i32_1 = arith.constant 0 : i32
    return %c0_i32, %c0_i32_0 : i32, i32
  }
  func.func @transform_3(%arg0: i32) -> (i32, i32, i32) {
    %c0_i32 = arith.constant 0 : i32
    %c0_i32_0 = arith.constant 0 : i32
    %c0_i32_1 = arith.constant 0 : i32
    return %arg0, %c0_i32, %c0_i32_0 : i32, i32, i32
  }
  func.func @transform_4(%arg0: i32) -> (i32, i32, i32) {
    %c0_i32 = arith.constant 0 : i32
    %c0_i32_0 = arith.constant 0 : i32
    %c0_i32_1 = arith.constant 0 : i32
    return %arg0, %c0_i32, %c0_i32_0 : i32, i32, i32
  }
}

</mosaic_0001>

<llo_original>
// kernel: tpu_custom_call.1
$region0: #{tpu_custom_call.1}
  #allocation0 [shape = 'u32[]', space=smem, size = 0x4, offset = 0x4, fixed_abs, tag = 'smem constant byte address 0x4 - core index']
  #allocation1 [shape = 'u32[144,128]{1,0:T(1,128)}', space=vmem, size = 0x12000, scoped, tag = 'internal scratch']
  %s0 = inlined_call_operand.hbm [shape: bf16[1,8,256], index: 0, kind: input, shape index: {}]
  %s1 = inlined_call_operand.vmem [shape: bf16[16,8], index: 1, kind: input, shape index: {}]
  %s2 = inlined_call_operand.hbm [shape: f32[8,23], index: 2, kind: input, shape index: {}]
  %s3 = inlined_call_operand.vmem [shape: f32[1,8,256], index: 3, kind: input, shape index: {}]
  %s4 = inlined_call_operand.hbm [shape: f32[1,2,256], index: 4, kind: output, shape index: {}]
  %s5 = sld [smem:[#allocation0]]
  $region34: #{tpu_custom_call.1} parent=0
    _
  %s7 = ssub.s32 1, %s5
  %s8 = scalar_select 0, %s7, %s5
  $region1: #{tpu_custom_call.1} parent=0
    #allocation2 [shape = 'u8[4096]{0}', space=vmem, size = 0x1000, scoped, tag = 'input window, operand 0, single buffered']
    #allocation3 [shape = 's32[1]{0}', space=sflag, size = 0x4, scoped, tag = 'scoped memory for tpu_custom_call.1']
    #allocation4 [shape = 's32[1]{0}', space=sflag, size = 0x4, scoped, tag = 'scoped memory for tpu_custom_call.1']
    #allocation5 [shape = 'u8[4096]{0}', space=vmem, size = 0x1000, scoped, tag = 'input window, operand 2, single buffered']
    #allocation6 [shape = 's32[1]{0}', space=sflag, size = 0x4, scoped, tag = 'scoped memory for tpu_custom_call.1']
    #allocation7 [shape = 'u8[2048]{0}', space=vmem, size = 0x800, scoped, tag = 'output window, operand 0, single buffered']
    %9 = vsyncpa [#allocation3], 0
    %10 = vsyncpa [#allocation6], 0
    %11 = vsyncpa [#allocation4], 0
    // Predicated region
    $region2: #{tpu_custom_call.1} parent=1 // pred_check
      _
    $region3: #{tpu_custom_call.1} parent=1 // pred_check_branch
      %13 = sbr.rel (0) target = $region5
    $region4: #{tpu_custom_call.1} parent=1 // pred_region
      %s15 = ssub.s32 128, 128
      %16 = vsyncadd [#allocation3], %s15
      %s18 = sshll.u32 [#allocation2], 4
      %s19 = int_to_ptr.vmem [resolvable:$true] %s18
      %21 = dma.hbm_to_vmem [thread:$0]  %s0, 128, %s19, [#allocation3]
    $region5: #{tpu_custom_call.1} parent=1 // pred_fallthru
      _
    // Predicated region
    $region6: #{tpu_custom_call.1} parent=1 // pred_check
      _
    $region7: #{tpu_custom_call.1} parent=1 // pred_check_branch
      %23 = sbr.rel (0) target = $region9
    $region8: #{tpu_custom_call.1} parent=1 // pred_region
      _
    $region9: #{tpu_custom_call.1} parent=1 // pred_fallthru
      _
    // Predicated region
    $region10: #{tpu_custom_call.1} parent=1 // pred_check
      _
    $region11: #{tpu_custom_call.1} parent=1 // pred_check_branch
      %25 = sbr.rel (0) target = $region13
    $region12: #{tpu_custom_call.1} parent=1 // pred_region
      %s27 = ssub.s32 128, 128
      %28 = vsyncadd [#allocation6], %s27
      %s30 = sshll.u32 [#allocation5], 4
      %s31 = int_to_ptr.vmem [resolvable:$true] %s30
      %33 = dma.hbm_to_vmem [thread:$0]  %s2, 128, %s31, [#allocation6]
    $region13: #{tpu_custom_call.1} parent=1 // pred_fallthru
      _
    // Predicated region
    $region14: #{tpu_custom_call.1} parent=1 // pred_check
      _
    $region15: #{tpu_custom_call.1} parent=1 // pred_check_branch
      %35 = sbr.rel (0) target = $region17
    $region16: #{tpu_custom_call.1} parent=1 // pred_region
      _
    $region17: #{tpu_custom_call.1} parent=1 // pred_fallthru
      _
    // Predicated region
    $region18: #{tpu_custom_call.1} parent=1 // pred_check
      _
    $region19: #{tpu_custom_call.1} parent=1 // pred_check_branch
      %37 = sbr.rel (0) target = $region21
    $region20: #{tpu_custom_call.1} parent=1 // pred_region
      %38 = dma.done [#allocation3], 128
    $region21: #{tpu_custom_call.1} parent=1 // pred_fallthru
      _
    // Predicated region
    $region22: #{tpu_custom_call.1} parent=1 // pred_check
      _
    $region23: #{tpu_custom_call.1} parent=1 // pred_check_branch
      %40 = sbr.rel (0) target = $region25
    $region24: #{tpu_custom_call.1} parent=1 // pred_region
      %41 = dma.done [#allocation6], 128
    $region25: #{tpu_custom_call.1} parent=1 // pred_fallthru
      _
    %v43 = vld [vmem:[#allocation5] sm:$0xff]
    %v44 = vld [vmem:[%s1] sm:$0xf]
    %v45 = vld [vmem:[%s1 + $0x4] sm:$0xf]
    %v46 = vld [vmem:[#allocation2] sm:$0xff]
    %v49 = vunpack.c.l.b16 %v44
    %v50 = vunpack.c.l.b16 %v45
    %v51 = vpack.c.b16 %v50, %v49
    %v53 = vunpack.c.l.b16 %v46
    %v54 = vunpack.c.h.b16 %v46
    %v55 = vpack.c.b16 %v53, %v53
    %v56 = vpack.c.b16 %v54, %v54
    %vm57 = vcmask 64512
    %v59 = vsel %vm57, %v51, 0
    %vm61 = vcmask 1043456
    %v63 = vsel %vm61, %v55, 0
    %v66 = vsel %vm61, %v56, 0
    %68 = vmatprep.subr.bf16.mxu0 0
    %69 = vmatpush1.bf16.msra.mxu0 0
    %70 = vmatprep.subr.bf16.mxu0 0
    %71 = vmatpush1.bf16.msra.mxu0 0
    %72 = vmatprep.subr.bf16.mxu0 0
    %73 = vmatpush1.bf16.msra.mxu0 0
    %74 = vmatprep.subr.bf16.mxu0 0
    %75 = vmatpush1.bf16.msra.mxu0 0
    %76 = vmatprep.subr.bf16.mxu0 0
    %77 = vmatpush1.bf16.msra.mxu0 0
    %78 = vmatprep.subr.bf16.mxu0 0
    %79 = vmatpush1.bf16.msra.mxu0 0
    %80 = vmatprep.subr.bf16.mxu0 0
    %81 = vmatpush1.bf16.msra.mxu0 0
    %82 = vmatprep.subr.bf16.mxu0 %v66
    %83 = vmatpush1.bf16.msra.mxu0 %v63
    %84 = vmatprep.subr.bf16.mxu0 0
    %85 = vmatpush2.bf16.msra.mxu0 0
    %86 = vmatprep.subr.bf16.mxu0 0
    %87 = vmatpush2.bf16.msra.mxu0 0
    %88 = vmatprep.subr.bf16.mxu0 0
    %89 = vmatpush2.bf16.msra.mxu0 0
    %90 = vmatprep.subr.bf16.mxu0 0
    %91 = vmatpush2.bf16.msra.mxu0 0
    %92 = vmatprep.subr.bf16.mxu0 0
    %93 = vmatpush2.bf16.msra.mxu0 0
    %94 = vmatprep.subr.bf16.mxu0 0
    %95 = vmatpush2.bf16.msra.mxu0 0
    %96 = vmatprep.subr.bf16.mxu0 0
    %97 = vmatpush2.bf16.msra.mxu0 0
    %98 = vmatprep.subr.bf16.mxu0 0
    %99 = vmatpush2.bf16.msra.mxu0 0
    %100 = vmatprep.mubr.bf16.mxu0 0
    %101 = vmatmul.mubr.bf16.gmra.mxu0 %v59
    %v102 = vpop.f32.mrf.mxu0
    %v103 = vadd.f32 0.0, %v102
    %v104 = vpop.f32.mrf.mxu0
    %v105 = vadd.f32 0.0, %v104
    %v106 = vpop.f32.mrf.mxu0
    %v107 = vadd.f32 0.0, %v106
    %v108 = vpop.f32.mrf.mxu0
    %v109 = vadd.f32 0.0, %v108
    %110 = vdwg.mxu0
    %112 = vset.pattern.permute.xlu0 18
    %113 = vperm.xlu0 %112, %v43
    %v114 = vpop.permute.xlu0 %113
    %v116 = vadd.f32 %v103, %v114
    %v117 = vadd.f32 %v105, %v114
    %118 = vset.pattern.permute.xlu0 19
    %119 = vperm.xlu0 %118, %v43
    %v120 = vpop.permute.xlu0 %119
    %v122 = vadd.f32 %v107, %v120
    %v123 = vadd.f32 %v109, %v120
    %v124 = vadd.f32 %v116, %v117
    %125 = vadd.xlane.f32.xlu0 %v124
    %v126 = vpop.xlane.xlu0 %125
    %v127 = vmul.f32 %v126, 0.00390625
    %v128 = vmax.f32 %v116, %v117
    %129 = vmax.xlane.f32.xlu0 %v128
    %v130 = vpop.xlane.xlu0 %129
    %vm131 = vcmask 7168
    %v132 = vsel %vm131, %v127, %v130
    %133 = vset.pattern.permute.xlu0 16
    %134 = vperm.xlu0 %133, %v43
    %v135 = vpop.permute.xlu0 %134
    %v137 = vsel %vm57, %v43, 0
    %139 = vmatprep.subr.mxu0 0.0
    %140 = vmatpush1.msra.mxu0 0.0
    %141 = vmatprep.subr.mxu0 0.0
    %142 = vmatpush1.msra.mxu0 0.0
    %143 = vmatprep.subr.mxu0 0.0
    %144 = vmatpush1.msra.mxu0 0.0
    %145 = vmatprep.subr.mxu0 0.0
    %146 = vmatpush1.msra.mxu0 0.0
    %147 = vmatprep.subr.mxu0 0.0
    %148 = vmatpush1.msra.mxu0 0.0
    %149 = vmatprep.subr.mxu0 0.0
    %150 = vmatpush1.msra.mxu0 0.0
    %151 = vmatprep.subr.mxu0 0.0
    %152 = vmatpush1.msra.mxu0 0.0
    %153 = vmatprep.subr.mxu0 0.0
    %154 = vmatpush1.msra.mxu0 0.0
    %155 = vmatprep.subr.mxu0 0.0
    %156 = vmatpush1.msra.mxu0 0.0
    %157 = vmatprep.subr.mxu0 0.0
    %158 = vmatpush1.msra.mxu0 0.0
    %159 = vmatprep.subr.mxu0 0.0
    %160 = vmatpush1.msra.mxu0 0.0
    %161 = vmatprep.subr.mxu0 0.0
    %162 = vmatpush1.msra.mxu0 0.0
    %163 = vmatprep.subr.mxu0 0.0
    %164 = vmatpush1.msra.mxu0 0.0
    %165 = vmatprep.subr.mxu0 0.0
    %166 = vmatpush1.msra.mxu0 0.0
    %167 = vmatprep.subr.mxu0 0.0
    %168 = vmatpush1.msra.mxu0 0.0
    %169 = vmatprep.subr.mxu0 0.0
    %170 = vmatpush1.msra.mxu0 %v132
    %171 = vmatprep.subr.mxu0 0.0
    %172 = vmatpush2.msra.mxu0 0.0
    %173 = vmatprep.subr.mxu0 0.0
    %174 = vmatpush2.msra.mxu0 0.0
    %175 = vmatprep.subr.mxu0 0.0
    %176 = vmatpush2.msra.mxu0 0.0
    %177 = vmatprep.subr.mxu0 0.0
    %178 = vmatpush2.msra.mxu0 0.0
    %179 = vmatprep.subr.mxu0 0.0
    %180 = vmatpush2.msra.mxu0 0.0
    %181 = vmatprep.subr.mxu0 0.0
    %182 = vmatpush2.msra.mxu0 0.0
    %183 = vmatprep.subr.mxu0 0.0
    %184 = vmatpush2.msra.mxu0 0.0
    %185 = vmatprep.subr.mxu0 0.0
    %186 = vmatpush2.msra.mxu0 0.0
    %187 = vmatprep.subr.mxu0 0.0
    %188 = vmatpush2.msra.mxu0 0.0
    %189 = vmatprep.subr.mxu0 0.0
    %190 = vmatpush2.msra.mxu0 0.0
    %191 = vmatprep.subr.mxu0 0.0
    %192 = vmatpush2.msra.mxu0 0.0
    %193 = vmatprep.subr.mxu0 0.0
    %194 = vmatpush2.msra.mxu0 0.0
    %195 = vmatprep.subr.mxu0 0.0
    %196 = vmatpush2.msra.mxu0 0.0
    %197 = vmatprep.subr.mxu0 0.0
    %198 = vmatpush2.msra.mxu0 0.0
    %199 = vmatprep.subr.mxu0 0.0
    %200 = vmatpush2.msra.mxu0 0.0
    %201 = vmatprep.subr.mxu0 0.0
    %202 = vmatpush2.msra.mxu0 0.0
    %203 = vmatprep.mubr.f32.mxu0 0.0
    %204 = vmatmul.mubr.f32.gmra.mxu0 %v137
    %v205 = vpop.f32.mrf.mxu0
    %v206 = vadd.f32 %v135, %v205
    %v207 = vpop.f32.mrf.mxu0
    %208 = vdwg.mxu0
    %v209 = vmax.f32 %v206, 0.0
    %210 = vset.pattern.permute.xlu0 17
    %211 = vperm.xlu0 %210, %v43
    %v212 = vpop.permute.xlu0 %211
    %214 = vrot.lane.b32.xlu0 %v43, 120
    %v215 = vpop.permute.xlu0 %214
    %v216 = vsel %vm57, %v215, 0
    %218 = vmatprep.subr.mxu0 0.0
    %219 = vmatpush1.msra.mxu0 0.0
    %220 = vmatprep.subr.mxu0 0.0
    %221 = vmatpush1.msra.mxu0 0.0
    %222 = vmatprep.subr.mxu0 0.0
    %223 = vmatpush1.msra.mxu0 0.0
    %224 = vmatprep.subr.mxu0 0.0
    %225 = vmatpush1.msra.mxu0 0.0
    %226 = vmatprep.subr.mxu0 0.0
    %227 = vmatpush1.msra.mxu0 0.0
    %228 = vmatprep.subr.mxu0 0.0
    %229 = vmatpush1.msra.mxu0 0.0
    %230 = vmatprep.subr.mxu0 0.0
    %231 = vmatpush1.msra.mxu0 0.0
    %232 = vmatprep.subr.mxu0 0.0
    %233 = vmatpush1.msra.mxu0 0.0
    %234 = vmatprep.subr.mxu0 0.0
    %235 = vmatpush1.msra.mxu0 0.0
    %236 = vmatprep.subr.mxu0 0.0
    %237 = vmatpush1.msra.mxu0 0.0
    %238 = vmatprep.subr.mxu0 0.0
    %239 = vmatpush1.msra.mxu0 0.0
    %240 = vmatprep.subr.mxu0 0.0
    %241 = vmatpush1.msra.mxu0 0.0
    %242 = vmatprep.subr.mxu0 0.0
    %243 = vmatpush1.msra.mxu0 0.0
    %244 = vmatprep.subr.mxu0 0.0
    %245 = vmatpush1.msra.mxu0 0.0
    %246 = vmatprep.subr.mxu0 0.0
    %247 = vmatpush1.msra.mxu0 0.0
    %248 = vmatprep.subr.mxu0 0.0
    %249 = vmatpush1.msra.mxu0 %v209
    %250 = vmatprep.subr.mxu0 0.0
    %251 = vmatpush2.msra.mxu0 0.0
    %252 = vmatprep.subr.mxu0 0.0
    %253 = vmatpush2.msra.mxu0 0.0
    %254 = vmatprep.subr.mxu0 0.0
    %255 = vmatpush2.msra.mxu0 0.0
    %256 = vmatprep.subr.mxu0 0.0
    %257 = vmatpush2.msra.mxu0 0.0
    %258 = vmatprep.subr.mxu0 0.0
    %259 = vmatpush2.msra.mxu0 0.0
    %260 = vmatprep.subr.mxu0 0.0
    %261 = vmatpush2.msra.mxu0 0.0
    %262 = vmatprep.subr.mxu0 0.0
    %263 = vmatpush2.msra.mxu0 0.0
    %264 = vmatprep.subr.mxu0 0.0
    %265 = vmatpush2.msra.mxu0 0.0
    %266 = vmatprep.subr.mxu0 0.0
    %267 = vmatpush2.msra.mxu0 0.0
    %268 = vmatprep.subr.mxu0 0.0
    %269 = vmatpush2.msra.mxu0 0.0
    %270 = vmatprep.subr.mxu0 0.0
    %271 = vmatpush2.msra.mxu0 0.0
    %272 = vmatprep.subr.mxu0 0.0
    %273 = vmatpush2.msra.mxu0 0.0
    %274 = vmatprep.subr.mxu0 0.0
    %275 = vmatpush2.msra.mxu0 0.0
    %276 = vmatprep.subr.mxu0 0.0
    %277 = vmatpush2.msra.mxu0 0.0
    %278 = vmatprep.subr.mxu0 0.0
    %279 = vmatpush2.msra.mxu0 0.0
    %280 = vmatprep.subr.mxu0 0.0
    %281 = vmatpush2.msra.mxu0 0.0
    %282 = vmatprep.mubr.f32.mxu0 0.0
    %283 = vmatmul.mubr.f32.gmra.mxu0 %v216
    %v284 = vpop.f32.mrf.mxu0
    %v285 = vadd.f32 %v212, %v284
    %v286 = vpop.f32.mrf.mxu0
    %287 = vdwg.mxu0
    %289 = vrot.lane.b32.xlu0 %v285, 127
    %v290 = vpop.permute.xlu0 %289
    %v292 = vadd.f32 %v285, %v290
    %v293 = vxor.u32 %v292, 2147483648
    %v294 = vmul.f32 %v293, 1.442695
    %v295 = vpow.pop %v294
    %v296 = vadd.f32 %v295, 1.0
    %v297 = vrcp.pop %v296
    %v298 = vmul.f32 1.0, %v297
    %300 = vset.pattern.permute.xlu0 0
    %301 = vperm.xlu0 %300, %v298
    %v302 = vpop.permute.xlu0 %301
    %v304 = vmul.f32 %v116, %v302
    %v305 = vmul.f32 %v117, %v302
    %v308 = vrot.slane %v304, 2
    %v309 = vrot.slane %v305, 2
    %v312 = vadd.f32 %v304, %v308
    %v313 = vadd.f32 %v305, %v309
    %v314 = vmax.f32 %v304, %v308
    %v315 = vmax.f32 %v305, %v309
    %v316 = vrot.slane %v304, 4
    %v317 = vrot.slane %v305, 4
    %v320 = vadd.f32 %v312, %v316
    %v321 = vadd.f32 %v313, %v317
    %v322 = vmax.f32 %v314, %v316
    %v323 = vmax.f32 %v315, %v317
    %v324 = vrot.slane %v304, 6
    %v325 = vrot.slane %v305, 6
    %v328 = vadd.f32 %v320, %v324
    %v329 = vadd.f32 %v321, %v325
    %v330 = vmax.f32 %v322, %v324
    %v331 = vmax.f32 %v323, %v325
    %v332 = vmul.f32 %v328, 0.25
    %v333 = vmul.f32 %v329, 0.25
    %334 = vrot.lane.b32.xlu0 %v43, 108
    %v335 = vpop.permute.xlu0 %334
    %s336 = vtos %v335
    %v337 = vstv %s336
    %v339 = vmul.f32 %v337, %v332
    %v340 = vmul.f32 %v337, %v333
    %341 = vrot.lane.b32.xlu0 %v43, 107
    %v342 = vpop.permute.xlu0 %341
    %s343 = vtos %v342
    %v344 = vstv %s343
    %v346 = vmul.f32 %v344, %v330
    %v347 = vmul.f32 %v344, %v331
    %v348 = vadd.f32 %v339, %v346
    %v349 = vadd.f32 %v340, %v347
    %350 = vrot.lane.b32.xlu0 %v43, 106
    %v351 = vpop.permute.xlu0 %350
    %s352 = vtos %v351
    %v353 = vstv %s352
    %v355 = vadd.f32 %v348, %v353
    %v356 = vadd.f32 %v349, %v353
    %v357 = vxor.u32 %v355, 2147483648
    %v358 = vxor.u32 %v356, 2147483648
    %v359 = vmul.f32 %v357, 1.442695
    %v360 = vpow.pop %v359
    %v361 = vmul.f32 %v358, 1.442695
    %v362 = vpow.pop %v361
    %v363 = vadd.f32 %v360, 1.0
    %v364 = vadd.f32 %v362, 1.0
    %v365 = vrcp.pop %v363
    %v366 = vmul.f32 1.0, %v365
    %v367 = vrcp.pop %v364
    %v368 = vmul.f32 1.0, %v367
    %v371 = vrot.slane %v366, 6
    %v372 = vrot.slane %v368, 6
    %v375 = vrot.slane %v366, 4
    %v376 = vrot.slane %v368, 4
    %v379 = vrot.slane %v366, 2
    %v380 = vrot.slane %v368, 2
    %vm383 = vcmask 1041408
    %v384 = vsel %vm383, %v366, %v371
    %v385 = vsel %vm383, %v368, %v372
    %v386 = vsel %vm61, %v384, %v375
    %v387 = vsel %vm61, %v385, %v376
    %vm388 = vcmask 1045504
    %v389 = vsel %vm388, %v386, %v379
    %v390 = vsel %vm388, %v387, %v380
    %v391 = vmul.f32 %v304, %v389
    %v392 = vmul.f32 %v305, %v390
    %v393 = vld [vmem:[%s3] sm:$0xff]
    %v394 = vld [vmem:[%s3 + $0x8] sm:$0xff]
    %v395 = vadd.f32 %v391, %v393
    %v396 = vadd.f32 %v392, %v394
    %v399 = vrot.slane %v395, 2
    %v400 = vrot.slane %v396, 2
    %v403 = vmax.f32 %v395, %v399
    %v404 = vmax.f32 %v396, %v400
    %v405 = vrot.slane %v395, 4
    %v406 = vrot.slane %v396, 4
    %v409 = vmax.f32 %v403, %v405
    %v410 = vmax.f32 %v404, %v406
    %v411 = vrot.slane %v395, 6
    %v412 = vrot.slane %v396, 6
    %v415 = vmax.f32 %v409, %v411
    %v416 = vmax.f32 %v410, %v412
    %v419 = vrot.slane %v415, 6
    %v420 = vrot.slane %v416, 6
    %v423 = vrot.slane %v415, 4
    %v424 = vrot.slane %v416, 4
    %v427 = vrot.slane %v415, 2
    %v428 = vrot.slane %v416, 2
    %v431 = vsel %vm383, %v415, %v419
    %v432 = vsel %vm383, %v416, %v420
    %v433 = vsel %vm61, %v431, %v423
    %v434 = vsel %vm61, %v432, %v424
    %v435 = vsel %vm388, %v433, %v427
    %v436 = vsel %vm388, %v434, %v428
    %v437 = vsub.f32 %v395, %v435
    %v438 = vsub.f32 %v396, %v436
    %v439 = vmul.f32 %v437, 1.442695
    %v440 = vpow.pop %v439
    %v441 = vmul.f32 %v438, 1.442695
    %v442 = vpow.pop %v441
    %v443 = vmul.f32 %v440, %v122
    %v444 = vmul.f32 %v442, %v123
    %v447 = vrot.slane %v440, 2
    %v448 = vrot.slane %v442, 2
    %v451 = vadd.f32 %v440, %v447
    %v452 = vadd.f32 %v442, %v448
    %v455 = vrot.slane %v443, 2
    %v456 = vrot.slane %v444, 2
    %v459 = vadd.f32 %v443, %v455
    %v460 = vadd.f32 %v444, %v456
    %v461 = vrot.slane %v440, 4
    %v462 = vrot.slane %v442, 4
    %v465 = vadd.f32 %v451, %v461
    %v466 = vadd.f32 %v452, %v462
    %v467 = vrot.slane %v443, 4
    %v468 = vrot.slane %v444, 4
    %v471 = vadd.f32 %v459, %v467
    %v472 = vadd.f32 %v460, %v468
    %v473 = vrot.slane %v440, 6
    %v474 = vrot.slane %v442, 6
    %v477 = vadd.f32 %v465, %v473
    %v478 = vadd.f32 %v466, %v474
    %v479 = vrot.slane %v443, 6
    %v480 = vrot.slane %v444, 6
    %v483 = vadd.f32 %v471, %v479
    %v484 = vadd.f32 %v472, %v480
    %v485 = vrcp.pop %v477
    %v486 = vmul.f32 %v483, %v485
    %v487 = vrcp.pop %v478
    %v488 = vmul.f32 %v484, %v487
    %v491 = vcombine.low %v486, %v488
    %v493 = vunpack.c.l.s4 1983009808
    %v494 = vunpack.c.0.s8 %v493
    %v495 = vlaneseq
    %v496 = vshrl.u32 %v495, 7
    %v497 = vsub.s32 %v494, %v496
    %v498 = vrot.slane %v491, %v497
    %500 = vst [vmem:[#allocation7] sm:$0xf] %v498
    // Predicated region
    $region26: #{tpu_custom_call.1} parent=1 // pred_check
      _
    $region27: #{tpu_custom_call.1} parent=1 // pred_check_branch
      %502 = sbr.rel (0) target = $region29
    $region28: #{tpu_custom_call.1} parent=1 // pred_region
      %s504 = ssub.s32 64, 64
      %505 = vsyncadd [#allocation4], %s504
      %s507 = sshll.u32 [#allocation7], 4
      %s508 = int_to_ptr.vmem [resolvable:$true] %s507
      %510 = dma.vmem_to_hbm [thread:$0]  %s508, 64, %s4, [#allocation4]
    $region29: #{tpu_custom_call.1} parent=1 // pred_fallthru
      _
    // Predicated region
    $region30: #{tpu_custom_call.1} parent=1 // pred_check
      _
    $region31: #{tpu_custom_call.1} parent=1 // pred_check_branch
      %512 = sbr.rel (0) target = $region33
    $region32: #{tpu_custom_call.1} parent=1 // pred_region
      %513 = dma.done [#allocation4], 64
    $region33: #{tpu_custom_call.1} parent=1 // pred_fallthru
      _
    %514 = vsyncpa [#allocation3], 1
    %515 = vsyncpa [#allocation6], 1
    %516 = vsyncpa [#allocation4], 1

</llo_original>
